<compile_context>
chip_gen: v7x
topology: tpu7x:2x2x1
jax: 0.10.0
libtpu: 0.0.40
codegen_flags: <defaults>
</compile_context>

<pallas_src>
import functools

import jax
import jax.numpy as jnp
from jax.experimental import pallas as pl
from jax.experimental.pallas import tpu as pltpu


def _round_up(x, m):
    return ((x + m - 1) // m) * m


def _soft_assign_kernel(emb_ref, cent_ref, q_ref, fpart_ref, *,
                        alpha, power_exp, batch_size, tile_b):
    """Phase 1: per-tile soft assignment q (K, tile_b) + cluster-frequency partial."""
    i = pl.program_id(0)

    e = emb_ref[...].astype(jnp.float32)          # (tile_b, D)
    c = cent_ref[...].astype(jnp.float32)         # (K, D)
    d = c.shape[1]

    # Squared distances in transposed (K, tile_b) layout:
    #   dist[k, b] = ||c_k||^2 - 2 c_k . e_b + ||e_b||^2
    cross = jax.lax.dot_general(                  # (K, tile_b)   MXU
        c, e, (((1,), (1,)), ((), ())),
        preferred_element_type=jnp.float32)
    # c_sq is a tiny K*D multiply + lane reduce; recomputed per tile so the grid axis
    # can stay "parallel" (no first-iteration init state) for megacore sharding.
    c_sq = jnp.sum(c * c, axis=1, keepdims=True)  # (K, 1)
    e_sq = jax.lax.dot_general(                   # (1, tile_b)   tiny MXU matmul
        jnp.ones((1, d), jnp.float32), e * e,
        (((1,), (1,)), ((), ())),
        preferred_element_type=jnp.float32)
    dist = c_sq - 2.0 * cross + e_sq              # (K, tile_b)

    ragged = (batch_size % tile_b) != 0           # static: padding only possible then
    if ragged:
        col = jax.lax.broadcasted_iota(jnp.int32, dist.shape, 1)
        valid = (i * tile_b + col) < batch_size
        dist = jnp.where(valid, dist, 0.0)        # select: garbage lanes discarded
    dist = jnp.maximum(dist, 0.0)                 # FP-cancellation guard

    # Student's-t soft assignment, normalized per sample (over K = sublanes).
    q = 1.0 / (1.0 + dist * (1.0 / alpha))
    if power_exp != 1.0:                          # (alpha + 1) / 2 == 1 for alpha == 1
        q = q ** power_exp
    q = q / jnp.sum(q, axis=0, keepdims=True)
    if ragged:
        q = jnp.where(valid, q, 0.0)              # padded samples contribute nothing

    q_ref[...] = q                                            # (K, tile_b) HBM write
    fpart_ref[0] = jnp.sum(q, axis=1, keepdims=True)          # (K, 1) partial freq


def _kl_kernel(q_ref, f_ref, out_ref, *, batch_size):
    """Phase 2: per-tile sharpened target p and KL(p || q), accumulated into out_ref."""
    i = pl.program_id(0)

    @pl.when(i == 0)
    def _init():
        out_ref[...] = jnp.zeros_like(out_ref)

    q = q_ref[...]                                # (K, tile_b) f32
    f = f_ref[...]                                # (K, 1) global cluster frequencies

    inv_f = 1.0 / (f + 1e-8)                      # K scalars, exact
    p = (q * q) * inv_f                           # (K, tile_b)
    p_sum = jnp.sum(p, axis=0, keepdims=True)     # (1, tile_b)
    p = p / jnp.where(p_sum > 0.0, p_sum, 1.0)    # 0/0 guard for padded lanes
    kl = p * jnp.log((p + 1e-8) / (q + 1e-8))     # padded lanes: 0 * log(1) == 0

    tile_sum = jnp.sum(jnp.sum(kl, axis=1, keepdims=True), axis=0, keepdims=True)
    out_ref[...] += tile_sum                      # (1, 1) resident accumulator

    @pl.when(i == pl.num_programs(0) - 1)
    def _finalize():
        out_ref[...] = out_ref[...] * (1.0 / batch_size)


def dec_clustering_loss(embeddings, cluster_centers, alpha=1.0, tile_b=8192):
    """Pallas implementation of DECClusteringLoss.forward."""
    b, d = embeddings.shape
    k, d2 = cluster_centers.shape
    assert d == d2, (embeddings.shape, cluster_centers.shape)

    # 128-aligned batch tile (lane-dense q stores), clamped to the padded batch.
    tile_b = max(128, min(_round_up(tile_b, 128), _round_up(b, 128)))
    n_tiles = pl.cdiv(b, tile_b)
    b_pad = n_tiles * tile_b
    power_exp = (alpha + 1.0) / 2.0

    # ---- Phase 1: q (transposed, padded) + per-tile cluster-frequency partials. ----
    phase1 = pl.pallas_call(
        functools.partial(_soft_assign_kernel, alpha=float(alpha),
                          power_exp=float(power_exp), batch_size=b, tile_b=tile_b),
        out_shape=(jax.ShapeDtypeStruct((k, b_pad), jnp.float32),
                   jax.ShapeDtypeStruct((n_tiles, k, 1), jnp.float32)),
        grid_spec=pltpu.PrefetchScalarGridSpec(
            num_scalar_prefetch=0,
            grid=(n_tiles,),
            in_specs=[
                pl.BlockSpec((tile_b, d), lambda i: (i, 0)),   # embeddings batch tile
                pl.BlockSpec((k, d), lambda i: (0, 0)),        # centers, resident
            ],
            out_specs=[
                pl.BlockSpec((k, tile_b), lambda i: (0, i)),   # q tile (lane-dense)
                pl.BlockSpec((1, k, 1), lambda i: (i, 0, 0)),  # f partial per tile
            ],
        ),
        compiler_params=pltpu.CompilerParams(
            dimension_semantics=("parallel",)),   # no carried state -> megacore OK
    )
    q, f_parts = phase1(embeddings, cluster_centers)

    # Tiny combine of the per-tile (and, on v7x, per-core) frequency partials.
    f = jnp.sum(f_parts, axis=0)                  # (K, 1)

    # ---- Phase 2: sharpened target + KL, pipelined over the same batch tiling. ----
    phase2 = pl.pallas_call(
        functools.partial(_kl_kernel, batch_size=b),
        out_shape=jax.ShapeDtypeStruct((1, 1), jnp.float32),
        grid_spec=pltpu.PrefetchScalarGridSpec(
            num_scalar_prefetch=0,
            grid=(n_tiles,),
            in_specs=[
                pl.BlockSpec((k, tile_b), lambda i: (0, i)),   # q tile
                pl.BlockSpec((k, 1), lambda i: (0, 0)),        # f, resident
            ],
            out_specs=pl.BlockSpec((1, 1), lambda i: (0, 0)),  # loss accumulator
        ),
        compiler_params=pltpu.CompilerParams(
            dimension_semantics=("arbitrary",)),  # resident scalar accumulator
    )
    loss = phase2(q, f)
    return loss[0, 0]


def _reference(embeddings, cluster_centers, alpha=1.0):
    """Pure-JAX reference mirroring the PyTorch forward exactly."""
    diff = embeddings[:, None, :] - cluster_centers[None, :, :]
    dist = jnp.sum(diff * diff, axis=2)
    q = 1.0 / (1.0 + dist / alpha)
    q = q ** ((alpha + 1.0) / 2.0)
    q = q / jnp.sum(q, axis=1, keepdims=True)
    f = jnp.sum(q, axis=0, keepdims=True)
    p = q ** 2 / (f + 1e-8)
    p = p / jnp.sum(p, axis=1, keepdims=True)
    return jnp.mean(jnp.sum(p * jnp.log((p + 1e-8) / (q + 1e-8)), axis=1))


if __name__ == "__main__":
    D, K = 32, 4          # latent_dim, n_clusters
    alpha = 1.0
    key = jax.random.PRNGKey(0)

    # Deterministic xavier_uniform-style bound for cluster_centers (K, D).
    bound = (6.0 / (K + D)) ** 0.5

    # Two configs: multi-tile aligned batch, and a ragged batch (exercises masking).
    for B, tile in ((384, 128), (100, 8192)):
        k_emb, k_cent = jax.random.split(jax.random.fold_in(key, B))
        embeddings = jax.random.normal(k_emb, (B, D), dtype=jnp.float32)
        cluster_centers = jax.random.uniform(
            k_cent, (K, D), dtype=jnp.float32, minval=-bound, maxval=bound)

        loss = dec_clustering_loss(embeddings, cluster_centers, alpha, tile_b=tile)
        loss = jax.block_until_ready(loss)

        ref = _reference(embeddings, cluster_centers, alpha)
        assert jnp.allclose(loss, ref, rtol=1e-4, atol=2e-5), (B, loss, ref)

    print("KERNEL_OK")
</pallas_src>

<mosaic_0001>
module attributes {stable_mosaic.version = 11 : i64} {
  func.func @_soft_assign_kernel(%arg0: i32, %arg1: memref<128x32xf32, #tpu.memory_space<vmem>>, %arg2: memref<4x32xf32, #tpu.memory_space<vmem>>, %arg3: memref<4x128xf32, #tpu.memory_space<vmem>>, %arg4: memref<1x4x1xf32, #tpu.memory_space<vmem>>) attributes {dimension_semantics = [#tpu.dimension_semantics<parallel>], iteration_bounds = array<i64: 3>, scalar_prefetch = 0 : i64, scratch_operands = 0 : i64, tpu.core_type = #tpu.core_type<tc>, window_params = [{transform_indices = @transform_0, window_bounds = array<i64: 128, 32>}, {pipeline_mode = #tpu.pipeline_mode<synchronous>, transform_indices = @transform_1, window_bounds = array<i64: 4, 32>}, {transform_indices = @transform_2, window_bounds = array<i64: 4, 128>}, {transform_indices = @transform_3, window_bounds = array<i64: 1, 4, 1>}]} {
    %c0 = arith.constant 0 : index
    %c0_0 = arith.constant 0 : index
    %0 = vector.load %arg1[%c0, %c0_0] : memref<128x32xf32, #tpu.memory_space<vmem>>, vector<128x32xf32>
    %c0_1 = arith.constant 0 : index
    %c0_2 = arith.constant 0 : index
    %1 = vector.load %arg2[%c0_1, %c0_2] : memref<4x32xf32, #tpu.memory_space<vmem>>, vector<4x32xf32>
    %cst = arith.constant dense<0.000000e+00> : vector<4x128xf32>
    %2 = tpu.matmul %1, %0, %cst {dimension_numbers = #tpu.dot_dimension_numbers<[1], [1], [0], [0], [0, 0, 1, 0], [], []>} : vector<4x32xf32>, vector<128x32xf32>, vector<4x128xf32> -> vector<4x128xf32>
    %3 = arith.mulf %1, %1 : vector<4x32xf32>
    %cst_3 = arith.constant dense<0.000000e+00> : vector<4xf32>
    %4 = vector.multi_reduction <add>, %3, %cst_3 [1] : vector<4x32xf32> to vector<4xf32>
    %5 = vector.shape_cast %4 : vector<4xf32> to vector<4x1xf32>
    %cst_4 = arith.constant 1.000000e+00 : f32
    %6 = vector.broadcast %cst_4 : f32 to vector<1x32xf32>
    %7 = arith.mulf %0, %0 : vector<128x32xf32>
    %cst_5 = arith.constant dense<0.000000e+00> : vector<1x128xf32>
    %8 = tpu.matmul %6, %7, %cst_5 {dimension_numbers = #tpu.dot_dimension_numbers<[1], [1], [0], [0], [0, 0, 1, 0], [], []>} : vector<1x32xf32>, vector<128x32xf32>, vector<1x128xf32> -> vector<1x128xf32>
    %cst_6 = arith.constant 2.000000e+00 : f32
    %9 = vector.broadcast %cst_6 : f32 to vector<4x128xf32>
    %10 = arith.mulf %9, %2 : vector<4x128xf32>
    %11 = vector.broadcast %5 : vector<4x1xf32> to vector<4x128xf32>
    %12 = arith.subf %11, %10 : vector<4x128xf32>
    %13 = vector.broadcast %8 : vector<1x128xf32> to vector<4x128xf32>
    %14 = arith.addf %12, %13 : vector<4x128xf32>
    %cst_7 = arith.constant 0.000000e+00 : f32
    %15 = vector.broadcast %cst_7 : f32 to vector<4x128xf32>
    %16 = arith.maximumf %14, %15 : vector<4x128xf32>
    %cst_8 = arith.constant 1.000000e+00 : f32
    %17 = vector.broadcast %cst_8 : f32 to vector<4x128xf32>
    %18 = arith.mulf %16, %17 : vector<4x128xf32>
    %cst_9 = arith.constant 1.000000e+00 : f32
    %19 = vector.broadcast %cst_9 : f32 to vector<4x128xf32>
    %20 = arith.addf %19, %18 : vector<4x128xf32>
    %cst_10 = arith.constant 1.000000e+00 : f32
    %21 = vector.broadcast %cst_10 : f32 to vector<4x128xf32>
    %22 = arith.divf %21, %20 : vector<4x128xf32>
    %cst_11 = arith.constant dense<0.000000e+00> : vector<128xf32>
    %23 = vector.multi_reduction <add>, %22, %cst_11 [0] : vector<4x128xf32> to vector<128xf32>
    %24 = vector.shape_cast %23 : vector<128xf32> to vector<1x128xf32>
    %25 = vector.broadcast %24 : vector<1x128xf32> to vector<4x128xf32>
    %26 = arith.divf %22, %25 : vector<4x128xf32>
    %c0_12 = arith.constant 0 : index
    %c0_13 = arith.constant 0 : index
    %27 = vector.load %arg3[%c0_12, %c0_13] : memref<4x128xf32, #tpu.memory_space<vmem>>, vector<4x128xf32>
    tpu.vector_store %arg3[%c0_12, %c0_13], %26 {strides = array<i32>} : memref<4x128xf32, #tpu.memory_space<vmem>>, vector<4x128xf32>,
    %cst_14 = arith.constant dense<0.000000e+00> : vector<4xf32>
    %28 = vector.multi_reduction <add>, %26, %cst_14 [1] : vector<4x128xf32> to vector<4xf32>
    %29 = vector.shape_cast %28 : vector<4xf32> to vector<4x1xf32>
    %c0_15 = arith.constant 0 : index
    %c0_16 = arith.constant 0 : index
    %c0_17 = arith.constant 0 : index
    %30 = vector.load %arg4[%c0_15, %c0_16, %c0_17] : memref<1x4x1xf32, #tpu.memory_space<vmem>>, vector<1x4x1xf32>
    %31 = vector.shape_cast %30 : vector<1x4x1xf32> to vector<4x1xf32>
    %32 = vector.shape_cast %29 : vector<4x1xf32> to vector<1x4x1xf32>
    tpu.vector_store %arg4[%c0_15, %c0_16, %c0_17], %32 {strides = array<i32>} : memref<1x4x1xf32, #tpu.memory_space<vmem>>, vector<1x4x1xf32>,
    return
  }
  func.func @transform_0(%arg0: i32) -> (i32, i32) {
    %c0_i32 = arith.constant 0 : i32
    %c0_i32_0 = arith.constant 0 : i32
    return %arg0, %c0_i32 : i32, i32
  }
  func.func @transform_1(%arg0: i32) -> (i32, i32) {
    %c0_i32 = arith.constant 0 : i32
    %c0_i32_0 = arith.constant 0 : i32
    %c0_i32_1 = arith.constant 0 : i32
    return %c0_i32, %c0_i32_0 : i32, i32
  }
  func.func @transform_2(%arg0: i32) -> (i32, i32) {
    %c0_i32 = arith.constant 0 : i32
    %c0_i32_0 = arith.constant 0 : i32
    return %c0_i32, %arg0 : i32, i32
  }
  func.func @transform_3(%arg0: i32) -> (i32, i32, i32) {
    %c0_i32 = arith.constant 0 : i32
    %c0_i32_0 = arith.constant 0 : i32
    %c0_i32_1 = arith.constant 0 : i32
    return %arg0, %c0_i32, %c0_i32_0 : i32, i32, i32
  }
}

</mosaic_0001>

<llo_original>
// kernel: tpu_custom_call.1
$region0: #{tpu_custom_call.1}
  #allocation0 [shape = 'u32[]', space=smem, size = 0x4, offset = 0x4, fixed_abs, tag = 'smem constant byte address 0x4 - core index']
  #allocation1 [shape = 'u32[144,128]{1,0:T(1,128)}', space=vmem, size = 0x12000, scoped, tag = 'internal scratch']
  %s0 = inlined_call_operand.vmem [shape: f32[384,32], index: 0, kind: input, shape index: {}]
  %s1 = inlined_call_operand.vmem [shape: f32[4,32], index: 1, kind: input, shape index: {}]
  %s2 = inlined_call_operand.hbm [shape: f32[4,384], index: 2, kind: output, shape index: {0}]
  %s3 = inlined_call_operand.vmem [shape: f32[3,4,1], index: 3, kind: output, shape index: {1}]
  %4 = xla_tuple %s2, %s3
  %s5 = sld [smem:[#allocation0]]
  $region49: #{tpu_custom_call.1} parent=0
    _
  %s7 = ssub.s32 1, %s5
  %s8 = scalar_select 0, %s7, %s5
  $region1: #{tpu_custom_call.1} parent=0
    #allocation2 [shape = 'u8[4096]{0}', space=vmem, size = 0x1000, scoped, tag = 'output window, operand 0']
    #allocation3 [shape = 's32[2]{0}', space=sflag, size = 0x8, scoped, tag = 'scoped memory for tpu_custom_call.1']
    %9 = vsyncpa [#allocation3], 0
    %s10 = scalar_lea.sflag [#allocation3], 1
    %11 = vsyncpa %s10, 0
    loop: start=0, step=1, limit=5
    $region2: #{tpu_custom_call.1} parent=1 // loop_pre_header
      _
    $region3: #{tpu_custom_call.1} parent=1 // loop_header
      %s13 = sphi 0, %s17
      %p14 = scmp.ge.s32.totalorder %s13, 5
      %s23 = sphi 0, %s25
      %s26 = sphi 0, %s23
      %s27 = sphi 0, %s26
      %s43 = sphi 0, %s27
      %s47 = sphi 0, %s47
      %s49 = sphi 0, %s47
      %s50 = sphi 0, %s49
      %s64 = sphi 0, %s50
      %s70 = sphi 0, %s72
      %s73 = sphi 0, %s70
      %s74 = sphi 0, %s73
      %s90 = sphi 0, %s74
      %s96 = sphi 0, %s98
      %s99 = sphi 0, %s96
      %s100 = sphi 0, %s99
      %s116 = sphi 0, %s100
    $region4: #{tpu_custom_call.1} parent=1 // loop_header_branch
      %16 = sbr.rel (%p14) target = $region8
    $region5: #{tpu_custom_call.1} parent=1 // loop_body
      %s18 = ssub.s32 %s13, 1
      %s19 = ssub.s32 %s13, 2
      %s20 = sadd.s32 %s13, 1
      %s21 = ssub.s32 %s13, %s20
      %p22 = scmp.eq.s32.totalorder %s21, 0
      %s24 = sadd.s32 %s23, 1
      %s25 = scalar_select %p22, %s23, %s24
      %p28 = pneg %p22
      %p29 = scmp.eq.s32.totalorder %s13, 2
      %p30 = por %p28, %p29
      %p31 = scmp.ne.s32.totalorder %s23, %s26
      %p32 = scmp.eq.s32.totalorder %s13, 0
      %p33 = por %p31, %p32
      %p34 = scmp.ne.s32.totalorder %s23, %s26
      %p35 = scmp.eq.s32.totalorder %s18, 2
      %p36 = por %p34, %p35
      %p37 = scmp.ne.s32.totalorder %s26, %s27
      %p38 = scmp.eq.s32.totalorder %s18, 0
      %p39 = por %p37, %p38
      %p40 = scmp.ne.s32.totalorder %s26, %s27
      %p41 = scmp.eq.s32.totalorder %s19, 2
      %p42 = por %p40, %p41
      %p44 = scmp.ne.s32.totalorder %s27, %s43
      %p45 = scmp.eq.s32.totalorder %s19, 0
      %p46 = por %p44, %p45
      %s48 = sadd.s32 %s47, 1
      %p51 = scmp.eq.s32.totalorder %s13, 2
      %p52 = scmp.ne.s32.totalorder %s47, %s49
      %p53 = scmp.eq.s32.totalorder %s13, 0
      %p54 = por %p52, %p53
      %p55 = scmp.ne.s32.totalorder %s47, %s49
      %p56 = scmp.eq.s32.totalorder %s18, 2
      %p57 = por %p55, %p56
      %p58 = scmp.ne.s32.totalorder %s49, %s50
      %p59 = scmp.eq.s32.totalorder %s18, 0
      %p60 = por %p58, %p59
      %p61 = scmp.ne.s32.totalorder %s49, %s50
      %p62 = scmp.eq.s32.totalorder %s19, 2
      %p63 = por %p61, %p62
      %p65 = scmp.ne.s32.totalorder %s50, %s64
      %p66 = scmp.eq.s32.totalorder %s19, 0
      %p67 = por %p65, %p66
      %s68 = ssub.s32 %s13, %s20
      %p69 = scmp.eq.s32.totalorder %s68, 0
      %s71 = sadd.s32 %s70, 1
      %s72 = scalar_select %p69, %s70, %s71
      %p75 = pneg %p69
      %p76 = scmp.eq.s32.totalorder %s13, 2
      %p77 = por %p75, %p76
      %p78 = scmp.ne.s32.totalorder %s70, %s73
      %p79 = scmp.eq.s32.totalorder %s13, 0
      %p80 = por %p78, %p79
      %p81 = scmp.ne.s32.totalorder %s70, %s73
      %p82 = scmp.eq.s32.totalorder %s18, 2
      %p83 = por %p81, %p82
      %p84 = scmp.ne.s32.totalorder %s73, %s74
      %p85 = scmp.eq.s32.totalorder %s18, 0
      %p86 = por %p84, %p85
      %p87 = scmp.ne.s32.totalorder %s73, %s74
      %p88 = scmp.eq.s32.totalorder %s19, 2
      %p89 = por %p87, %p88
      %p91 = scmp.ne.s32.totalorder %s74, %s90
      %p92 = scmp.eq.s32.totalorder %s19, 0
      %p93 = por %p91, %p92
      %s94 = ssub.s32 %s13, %s20
      %p95 = scmp.eq.s32.totalorder %s94, 0
      %s97 = sadd.s32 %s96, 1
      %s98 = scalar_select %p95, %s96, %s97
      %p101 = pneg %p95
      %p102 = scmp.eq.s32.totalorder %s13, 2
      %p103 = por %p101, %p102
      %p104 = scmp.ne.s32.totalorder %s96, %s99
      %p105 = scmp.eq.s32.totalorder %s13, 0
      %p106 = por %p104, %p105
      %p107 = scmp.ne.s32.totalorder %s96, %s99
      %p108 = scmp.eq.s32.totalorder %s18, 2
      %p109 = por %p107, %p108
      %p110 = scmp.ne.s32.totalorder %s99, %s100
      %p111 = scmp.eq.s32.totalorder %s18, 0
      %p112 = por %p110, %p111
      %p113 = scmp.ne.s32.totalorder %s99, %s100
      %p114 = scmp.eq.s32.totalorder %s19, 2
      %p115 = por %p113, %p114
      %p117 = scmp.ne.s32.totalorder %s100, %s116
      %p118 = scmp.eq.s32.totalorder %s19, 0
      %p119 = por %p117, %p118
      %p120 = scmp.le.s32.totalorder 1, %s13
      %p121 = scmp.lt.s32.totalorder %s13, 4
      %p122 = pnand %p120, %p121
      %p123 = pneg %p122
      // Predicated region
      $region9: #{tpu_custom_call.1} parent=5 // pred_check
        _
      $region10: #{tpu_custom_call.1} parent=5 // pred_check_branch
        %125 = sbr.rel (%p122) target = $region12
      $region11: #{tpu_custom_call.1} parent=5 // pred_region
        %s126 = ssub.s32 %s13, 1
        // Predicated region
        $region13: #{tpu_custom_call.1} parent=11 // pred_check
          %p127 = pneg %p60
        $region14: #{tpu_custom_call.1} parent=11 // pred_check_branch
          %129 = sbr.rel (%p127) target = $region16
        $region15: #{tpu_custom_call.1} parent=11 // pred_region
          _
        $region16: #{tpu_custom_call.1} parent=11 // pred_fallthru
          _
      $region12: #{tpu_custom_call.1} parent=5 // pred_fallthru
        _
      %p130 = scmp.lt.s32.totalorder %s13, 3
      // Predicated region
      $region17: #{tpu_custom_call.1} parent=5 // pred_check
        %p131 = pneg %p130
      $region18: #{tpu_custom_call.1} parent=5 // pred_check_branch
        %133 = sbr.rel (%p131) target = $region20
      $region19: #{tpu_custom_call.1} parent=5 // pred_region
        // Predicated region
        $region21: #{tpu_custom_call.1} parent=19 // pred_check
          %p134 = pneg %p33
        $region22: #{tpu_custom_call.1} parent=19 // pred_check_branch
          %136 = sbr.rel (%p134) target = $region24
        $region23: #{tpu_custom_call.1} parent=19 // pred_region
          %s137 = smul.u32 16, %s13
          %p138 = scmp.lt.s32.totalorder %s137, 47
          %s139 = scalar_select %p138, %s137, 47
          %s140 = smul.addr %s139, 8
          %s141 = scalar_lea.vmem %s0, %s140
          %s142 = smul.u32 16, %s13
        $region24: #{tpu_custom_call.1} parent=19 // pred_fallthru
          _
      $region20: #{tpu_custom_call.1} parent=5 // pred_fallthru
        _
      %p143 = scmp.le.s32.totalorder 1, %s13
      %p144 = scmp.lt.s32.totalorder %s13, 4
      %p145 = pnand %p143, %p144
      %p146 = pneg %p145
      // Predicated region
      $region25: #{tpu_custom_call.1} parent=5 // pred_check
        _
      $region26: #{tpu_custom_call.1} parent=5 // pred_check_branch
        %148 = sbr.rel (%p145) target = $region28
      $region27: #{tpu_custom_call.1} parent=5 // pred_region
        %s149 = ssub.s32 %s13, 1
        %s150 = smul.u32 16, %s18
        %p151 = scmp.lt.s32.totalorder %s150, 47
        %s152 = scalar_select %p151, %s150, 47
        %s153 = smul.addr %s152, 8
        %s154 = scalar_lea.vmem %s0, %s153
        %p155 = pneg %p39
        %p156 = pneg %p36
        %p157 = pneg %p60
        %p158 = pneg %p57
        %p159 = pneg %p86
        %p160 = pneg %p83
        %s161 = sand.u32 %s73, 1
        %s162 = scalar_lea.sflag [#allocation3], %s161
        %s163 = sand.u32 %s73, 1
        %s164 = smul.addr %s163, 4
        %s165 = scalar_lea.vmem [#allocation2], %s164
        %p166 = pneg %p112
        %p167 = pneg %p109
        %p168 = scmp.lt.s32.totalorder %s18, 2
        %s169 = scalar_select %p168, %s18, 2
        %s170 = smul.addr %s169, 4
        %s171 = scalar_lea.vmem %s3, %s170
        %s172 = smul.u32 16, %s18
        %p173 = scmp.lt.s32.totalorder %s172, 47
        %s174 = scalar_select %p173, %s172, 47
        %s175 = smul.addr %s174, 8
        %s176 = scalar_lea.vmem %s0, %s175
        %s177 = smul.u32 16, %s18
        %p178 = scmp.lt.s32.totalorder %s18, 2
        %s179 = scalar_select %p178, %s18, 2
        %s180 = smul.addr %s179, 4
        %s181 = scalar_lea.vmem %s3, %s180
        %v182 = vld [vmem:[%s176] sm:$0xff]
        %v183 = vld [vmem:[%s176 + $0x8] sm:$0xff]
        %v184 = vld [vmem:[%s176 + $0x10] sm:$0xff]
        %v185 = vld [vmem:[%s176 + $0x18] sm:$0xff]
        %v186 = vld [vmem:[%s176 + $0x20] sm:$0xff]
        %v187 = vld [vmem:[%s176 + $0x28] sm:$0xff]
        %v188 = vld [vmem:[%s176 + $0x30] sm:$0xff]
        %v189 = vld [vmem:[%s176 + $0x38] sm:$0xff]
        %v190 = vld [vmem:[%s176 + $0x40] sm:$0xff]
        %v191 = vld [vmem:[%s176 + $0x48] sm:$0xff]
        %v192 = vld [vmem:[%s176 + $0x50] sm:$0xff]
        %v193 = vld [vmem:[%s176 + $0x58] sm:$0xff]
        %v194 = vld [vmem:[%s176 + $0x60] sm:$0xff]
        %v195 = vld [vmem:[%s176 + $0x68] sm:$0xff]
        %v196 = vld [vmem:[%s176 + $0x70] sm:$0xff]
        %v197 = vld [vmem:[%s176 + $0x78] sm:$0xff]
        %v198 = vld [vmem:[%s1] sm:$0xf]
        %vm199 = vcmask 261120
        %v201 = vsel %vm199, %v198, 0
        %v204 = vsel %vm199, %v182, 0
        %v207 = vsel %vm199, %v183, 0
        %v210 = vsel %vm199, %v184, 0
        %v213 = vsel %vm199, %v185, 0
        %v216 = vsel %vm199, %v186, 0
        %v219 = vsel %vm199, %v187, 0
        %v222 = vsel %vm199, %v188, 0
        %v225 = vsel %vm199, %v189, 0
        %v228 = vsel %vm199, %v190, 0
        %v231 = vsel %vm199, %v191, 0
        %v234 = vsel %vm199, %v192, 0
        %v237 = vsel %vm199, %v193, 0
        %v240 = vsel %vm199, %v194, 0
        %v243 = vsel %vm199, %v195, 0
        %v246 = vsel %vm199, %v196, 0
        %v249 = vsel %vm199, %v197, 0
        %251 = vmatprep.subr.mxu0 0.0
        %252 = vmatpush1.xpose.msra.mxu0 %v204
        %253 = vmatprep.subr.mxu0 0.0
        %254 = vmatpush1.xpose.msra.mxu0 %v207
        %255 = vmatprep.subr.mxu0 0.0
        %256 = vmatpush1.xpose.msra.mxu0 %v210
        %257 = vmatprep.subr.mxu0 0.0
        %258 = vmatpush1.xpose.msra.mxu0 %v213
        %259 = vmatprep.subr.mxu0 0.0
        %260 = vmatpush1.xpose.msra.mxu0 %v216
        %261 = vmatprep.subr.mxu0 0.0
        %262 = vmatpush1.xpose.msra.mxu0 %v219
        %263 = vmatprep.subr.mxu0 0.0
        %264 = vmatpush1.xpose.msra.mxu0 %v222
        %265 = vmatprep.subr.mxu0 0.0
        %266 = vmatpush1.xpose.msra.mxu0 %v225
        %267 = vmatprep.subr.mxu0 0.0
        %268 = vmatpush1.xpose.msra.mxu0 %v228
        %269 = vmatprep.subr.mxu0 0.0
        %270 = vmatpush1.xpose.msra.mxu0 %v231
        %271 = vmatprep.subr.mxu0 0.0
        %272 = vmatpush1.xpose.msra.mxu0 %v234
        %273 = vmatprep.subr.mxu0 0.0
        %274 = vmatpush1.xpose.msra.mxu0 %v237
        %275 = vmatprep.subr.mxu0 0.0
        %276 = vmatpush1.xpose.msra.mxu0 %v240
        %277 = vmatprep.subr.mxu0 0.0
        %278 = vmatpush1.xpose.msra.mxu0 %v243
        %279 = vmatprep.subr.mxu0 0.0
        %280 = vmatpush1.xpose.msra.mxu0 %v246
        %281 = vmatprep.subr.mxu0 0.0
        %282 = vmatpush1.xpose.msra.mxu0 %v249
        %283 = vmatprep.subr.mxu0 0.0
        %284 = vmatpush1.xpose.msra.mxu0 0.0
        %285 = vmatprep.subr.mxu0 0.0
        %286 = vmatpush1.xpose.msra.mxu0 0.0
        %287 = vmatprep.subr.mxu0 0.0
        %288 = vmatpush1.xpose.msra.mxu0 0.0
        %289 = vmatprep.subr.mxu0 0.0
        %290 = vmatpush1.xpose.msra.mxu0 0.0
        %291 = vmatprep.subr.mxu0 0.0
        %292 = vmatpush1.xpose.msra.mxu0 0.0
        %293 = vmatprep.subr.mxu0 0.0
        %294 = vmatpush1.xpose.msra.mxu0 0.0
        %295 = vmatprep.subr.mxu0 0.0
        %296 = vmatpush1.xpose.msra.mxu0 0.0
        %297 = vmatprep.subr.mxu0 0.0
        %298 = vmatpush1.xpose.msra.mxu0 0.0
        %299 = vmatprep.subr.mxu0 0.0
        %300 = vmatpush1.xpose.msra.mxu0 0.0
        %301 = vmatprep.subr.mxu0 0.0
        %302 = vmatpush1.xpose.msra.mxu0 0.0
        %303 = vmatprep.subr.mxu0 0.0
        %304 = vmatpush1.xpose.msra.mxu0 0.0
        %305 = vmatprep.subr.mxu0 0.0
        %306 = vmatpush1.xpose.msra.mxu0 0.0
        %307 = vmatprep.subr.mxu0 0.0
        %308 = vmatpush1.xpose.msra.mxu0 0.0
        %309 = vmatprep.subr.mxu0 0.0
        %310 = vmatpush1.xpose.msra.mxu0 0.0
        %311 = vmatprep.subr.mxu0 0.0
        %312 = vmatpush1.xpose.msra.mxu0 0.0
        %313 = vmatprep.subr.mxu0 0.0
        %314 = vmatpush1.xpose.msra.mxu0 0.0
        %315 = vmatprep.mubr.f32.mxu0 0.0
        %316 = vmatmul.mubr.f32.gmra.mrb[0].mxu0 %v201
        %v317 = vpop.f32.mrb[0].mxu0
        %v318 = vadd.f32 0.0, %v317
        %v319 = vpop.f32.mrb[0].mxu0
        %320 = vdwg.mxu0
        %v321 = vmul.f32 %v198, %v198
        %vm322 = vcmask 257024
        %v323 = vsel %vm322, %v321, 0.0
        %324 = vadd.xlane.f32.xlu0 %v323
        %v325 = vpop.xlane.xlu0 %324
        %v326 = vmul.f32 %v182, %v182
        %v327 = vmul.f32 %v183, %v183
        %v328 = vmul.f32 %v184, %v184
        %v329 = vmul.f32 %v185, %v185
        %v330 = vmul.f32 %v186, %v186
        %v331 = vmul.f32 %v187, %v187
        %v332 = vmul.f32 %v188, %v188
        %v333 = vmul.f32 %v189, %v189
        %v334 = vmul.f32 %v190, %v190
        %v335 = vmul.f32 %v191, %v191
        %v336 = vmul.f32 %v192, %v192
        %v337 = vmul.f32 %v193, %v193
        %v338 = vmul.f32 %v194, %v194
        %v339 = vmul.f32 %v195, %v195
        %v340 = vmul.f32 %v196, %v196
        %v341 = vmul.f32 %v197, %v197
        %v343 = vsel %vm199, 1.0, 0
        %v346 = vsel %vm199, %v326, 0
        %v349 = vsel %vm199, %v327, 0
        %v352 = vsel %vm199, %v328, 0
        %v355 = vsel %vm199, %v329, 0
        %v358 = vsel %vm199, %v330, 0
        %v361 = vsel %vm199, %v331, 0
        %v364 = vsel %vm199, %v332, 0
        %v367 = vsel %vm199, %v333, 0
        %v370 = vsel %vm199, %v334, 0
        %v373 = vsel %vm199, %v335, 0
        %v376 = vsel %vm199, %v336, 0
        %v379 = vsel %vm199, %v337, 0
        %v382 = vsel %vm199, %v338, 0
        %v385 = vsel %vm199, %v339, 0
        %v388 = vsel %vm199, %v340, 0
        %v391 = vsel %vm199, %v341, 0
        %393 = vmatprep.subr.mxu0 0.0
        %394 = vmatpush1.xpose.msra.mxu0 %v346
        %395 = vmatprep.subr.mxu0 0.0
        %396 = vmatpush1.xpose.msra.mxu0 %v349
        %397 = vmatprep.subr.mxu0 0.0
        %398 = vmatpush1.xpose.msra.mxu0 %v352
        %399 = vmatprep.subr.mxu0 0.0
        %400 = vmatpush1.xpose.msra.mxu0 %v355
        %401 = vmatprep.subr.mxu0 0.0
        %402 = vmatpush1.xpose.msra.mxu0 %v358
        %403 = vmatprep.subr.mxu0 0.0
        %404 = vmatpush1.xpose.msra.mxu0 %v361
        %405 = vmatprep.subr.mxu0 0.0
        %406 = vmatpush1.xpose.msra.mxu0 %v364
        %407 = vmatprep.subr.mxu0 0.0
        %408 = vmatpush1.xpose.msra.mxu0 %v367
        %409 = vmatprep.subr.mxu0 0.0
        %410 = vmatpush1.xpose.msra.mxu0 %v370
        %411 = vmatprep.subr.mxu0 0.0
        %412 = vmatpush1.xpose.msra.mxu0 %v373
        %413 = vmatprep.subr.mxu0 0.0
        %414 = vmatpush1.xpose.msra.mxu0 %v376
        %415 = vmatprep.subr.mxu0 0.0
        %416 = vmatpush1.xpose.msra.mxu0 %v379
        %417 = vmatprep.subr.mxu0 0.0
        %418 = vmatpush1.xpose.msra.mxu0 %v382
        %419 = vmatprep.subr.mxu0 0.0
        %420 = vmatpush1.xpose.msra.mxu0 %v385
        %421 = vmatprep.subr.mxu0 0.0
        %422 = vmatpush1.xpose.msra.mxu0 %v388
        %423 = vmatprep.subr.mxu0 0.0
        %424 = vmatpush1.xpose.msra.mxu0 %v391
        %425 = vmatprep.subr.mxu0 0.0
        %426 = vmatpush1.xpose.msra.mxu0 0.0
        %427 = vmatprep.subr.mxu0 0.0
        %428 = vmatpush1.xpose.msra.mxu0 0.0
        %429 = vmatprep.subr.mxu0 0.0
        %430 = vmatpush1.xpose.msra.mxu0 0.0
        %431 = vmatprep.subr.mxu0 0.0
        %432 = vmatpush1.xpose.msra.mxu0 0.0
        %433 = vmatprep.subr.mxu0 0.0
        %434 = vmatpush1.xpose.msra.mxu0 0.0
        %435 = vmatprep.subr.mxu0 0.0
        %436 = vmatpush1.xpose.msra.mxu0 0.0
        %437 = vmatprep.subr.mxu0 0.0
        %438 = vmatpush1.xpose.msra.mxu0 0.0
        %439 = vmatprep.subr.mxu0 0.0
        %440 = vmatpush1.xpose.msra.mxu0 0.0
        %441 = vmatprep.subr.mxu0 0.0
        %442 = vmatpush1.xpose.msra.mxu0 0.0
        %443 = vmatprep.subr.mxu0 0.0
        %444 = vmatpush1.xpose.msra.mxu0 0.0
        %445 = vmatprep.subr.mxu0 0.0
        %446 = vmatpush1.xpose.msra.mxu0 0.0
        %447 = vmatprep.subr.mxu0 0.0
        %448 = vmatpush1.xpose.msra.mxu0 0.0
        %449 = vmatprep.subr.mxu0 0.0
        %450 = vmatpush1.xpose.msra.mxu0 0.0
        %451 = vmatprep.subr.mxu0 0.0
        %452 = vmatpush1.xpose.msra.mxu0 0.0
        %453 = vmatprep.subr.mxu0 0.0
        %454 = vmatpush1.xpose.msra.mxu0 0.0
        %455 = vmatprep.subr.mxu0 0.0
        %456 = vmatpush1.xpose.msra.mxu0 0.0
        %457 = vmatprep.mubr.f32.mxu0 0.0
        %458 = vmatmul.mubr.f32.gmra.mrb[0].mxu0 %v343
        %v459 = vpop.f32.mrb[0].mxu0
        %v460 = vadd.f32 0.0, %v459
        %v461 = vpop.f32.mrb[0].mxu0
        %462 = vdwg.mxu0
        %v463 = vmul.f32 %v318, 2.0
        %v464 = vsub.f32 %v325, %v463
        %v465 = vlaneseq
        %v466 = vshrl.u32 %v465, 7
        %v467 = vsub.s32 0, %v466
        %v468 = vrot.slane %v460, %v467
        %v469 = vadd.f32 %v464, %v468
        %v470 = vmax.f32 %v469, 0.0
        %v471 = vadd.f32 %v470, 1.0
        %v472 = vrcp.pop %v471
        %v473 = vmul.f32 1.0, %v472
        %vm474 = vcmask 1043456
        %v475 = vsel %vm474, %v473, 0.0
        %v476 = vrot.slane %v475, 4
        %v477 = vadd.f32 %v475, %v476
        %v478 = vrot.slane %v477, 2
        %v479 = vadd.f32 %v477, %v478
        %v480 = vrot.slane %v479, 1
        %v481 = vadd.f32 %v479, %v480
        %v482 = vrcp.pop %v481
        %v483 = vmul.f32 %v473, %v482
        %484 = vst [vmem:[%s165] sm:$0xf] %v483
        %v485 = vsel %vm474, %v483, 0.0
        %486 = vadd.xlane.f32.xlu0 %v485
        %v487 = vpop.xlane.xlu0 %486
        %vm488 = vcmask 3072
        %489 = vst.msk [vmem:[%s181] sm:$0xf] %vm488, %v487
        %s490 = sand.u32 %s73, 1
        %s491 = scalar_lea.sflag [#allocation3], %s490
        %s492 = sand.u32 %s73, 1
        %s493 = smul.addr %s492, 4
        %s494 = scalar_lea.vmem [#allocation2], %s493
        %p495 = scmp.lt.s32.totalorder %s18, 2
        %s496 = scalar_select %p495, %s18, 2
        %s497 = smul.addr %s496, 4
        %s498 = scalar_lea.vmem %s3, %s497
        // Predicated region
        $region29: #{tpu_custom_call.1} parent=27 // pred_check
          %p499 = pneg %p83
        $region30: #{tpu_custom_call.1} parent=27 // pred_check_branch
          %501 = sbr.rel (%p499) target = $region32
        $region31: #{tpu_custom_call.1} parent=27 // pred_region
          %s503 = ssub.s32 64, 64
          %504 = vsyncadd %s491, %s503
          %s505 = smul.addr %s18, 64
          %s506 = scalar_lea.hbm %s2, %s505
          %s508 = sshll.u32 %s494, 4
          %s509 = int_to_ptr.vmem [resolvable:$true] %s508
          %511 = dma.vmem_to_hbm [thread:$0]  %s509, 64, %s506, %s491
        $region32: #{tpu_custom_call.1} parent=27 // pred_fallthru
          _
        // Predicated region
        $region33: #{tpu_custom_call.1} parent=27 // pred_check
          %p512 = pneg %p109
        $region34: #{tpu_custom_call.1} parent=27 // pred_check_branch
          %514 = sbr.rel (%p512) target = $region36
        $region35: #{tpu_custom_call.1} parent=27 // pred_region
          _
        $region36: #{tpu_custom_call.1} parent=27 // pred_fallthru
          _
      $region28: #{tpu_custom_call.1} parent=5 // pred_fallthru
        _
      %p515 = scmp.le.s32.totalorder 2, %s13
      // Predicated region
      $region37: #{tpu_custom_call.1} parent=5 // pred_check
        %p516 = pneg %p515
      $region38: #{tpu_custom_call.1} parent=5 // pred_check_branch
        %518 = sbr.rel (%p516) target = $region40
      $region39: #{tpu_custom_call.1} parent=5 // pred_region
        %s519 = ssub.s32 %s13, 2
        // Predicated region
        $region41: #{tpu_custom_call.1} parent=39 // pred_check
          %p520 = pneg %p89
        $region42: #{tpu_custom_call.1} parent=39 // pred_check_branch
          %522 = sbr.rel (%p520) target = $region44
        $region43: #{tpu_custom_call.1} parent=39 // pred_region
          %s523 = sand.u32 %s74, 1
          %s524 = scalar_lea.sflag [#allocation3], %s523
          %s525 = sand.u32 %s74, 1
          %s526 = smul.addr %s525, 4
          %s527 = scalar_lea.vmem [#allocation2], %s526
          %528 = dma.done %s524, 64
        $region44: #{tpu_custom_call.1} parent=39 // pred_fallthru
          _
        // Predicated region
        $region45: #{tpu_custom_call.1} parent=39 // pred_check
          %p529 = pneg %p115
        $region46: #{tpu_custom_call.1} parent=39 // pred_check_branch
          %531 = sbr.rel (%p529) target = $region48
        $region47: #{tpu_custom_call.1} parent=39 // pred_region
          %p532 = scmp.lt.s32.totalorder %s19, 2
          %s533 = scalar_select %p532, %s19, 2
          %s534 = smul.addr %s533, 4
          %s535 = scalar_lea.vmem %s3, %s534
        $region48: #{tpu_custom_call.1} parent=39 // pred_fallthru
          _
      $region40: #{tpu_custom_call.1} parent=5 // pred_fallthru
        _
    $region6: #{tpu_custom_call.1} parent=1 // loop_footer
      %s17 = sadd.s32 1, %s13
    $region7: #{tpu_custom_call.1} parent=1 // loop_footer_branch
      %12 = sbr.rel target = $region3
    $region8: #{tpu_custom_call.1} parent=1 // loop_exit
      _
    %536 = vsyncpa [#allocation3], 1
    %s537 = scalar_lea.sflag [#allocation3], 1
    %538 = vsyncpa %s537, 1

</llo_original>
